<compile_context>
chip_gen: v7x
topology: tpu7x:2x2x1
jax: 0.10.0
libtpu: 0.0.40
codegen_flags: <defaults>
</compile_context>

<pallas_src>
import functools

import jax
import jax.numpy as jnp
from jax.experimental import pallas as pl
from jax.experimental.pallas import tpu as pltpu

EPS = 1e-6
INV_SQRT2 = 0.7071067811865476


def _round_up(x, m):
  return ((x + m - 1) // m) * m


def _chip_defaults():
  """(default row tile, vmem_limit_bytes) per TPU generation."""
  try:
    kind = jax.devices()[0].device_kind.lower()
  except Exception:  # pragma: no cover
    kind = ""
  if "v5" in kind or "v6" in kind:          # 128 MiB physical VMEM
    return 512, 96 * 1024 * 1024
  if "v7" in kind:                          # 64 MiB physical VMEM per TC
    return 256, 48 * 1024 * 1024
  return 256, None                          # unknown: conservative, default limit


def _pick_tile(n_rows, desired):
  """Pick TM (multiple of 8). Prefer a divisor of N so no padding is needed."""
  desired = max(8, _round_up(desired, 8))
  if n_rows % 8 == 0:
    top = min(desired, n_rows)
    for cand in range(top - (top % 8), 7, -8):
      if n_rows % cand == 0:
        return cand, n_rows                 # no padding
  tm = min(desired, _round_up(n_rows, 8))
  return tm, _round_up(n_rows, tm)          # padded fallback


def _layernorm(x, gamma, beta):
  # Biased-variance LN over the last axis == both the channels_first branch and
  # F.layer_norm (channels_last) of the PyTorch LayerNorm module.
  u = jnp.mean(x, axis=-1, keepdims=True)
  xc = x - u
  s = jnp.mean(xc * xc, axis=-1, keepdims=True)
  return xc * jax.lax.rsqrt(s + EPS) * gamma + beta


def _erf(x):
  # fp32-accurate rational approximation (Abramowitz & Stegun 7.1.26, ~1.5e-7).
  a1, a2, a3, a4, a5 = 0.254829592, -0.284496736, 1.421413741, -1.453152027, 1.061405429
  p = 0.3275911
  sgn = jnp.sign(x)
  ax = jnp.abs(x)
  d = 1.0 + p * ax
  t0 = pl.reciprocal(d, approx=True)        # EUP
  t = t0 * (2.0 - d * t0)                   # one Newton step
  poly = ((((a5 * t + a4) * t + a3) * t + a2) * t + a1) * t
  return sgn * (1.0 - poly * jnp.exp(-ax * ax))


def _gelu(x):
  return 0.5 * x * (1.0 + _erf(x * INV_SQRT2))


# ------------------------- Pallas kernels ----------------------------------


def _ln_proj_kernel(x_ref, g_ref, b_ref, w_ref, bw_ref, o_ref):
  # norm1 (channels_first LN == LN over C in channels-last layout) + proj_in 1x1.
  y = _layernorm(x_ref[...], g_ref[...], b_ref[...])
  o_ref[...] = jnp.dot(y.astype(w_ref.dtype), w_ref[...],
                       preferred_element_type=jnp.float32) + bw_ref[...]


def _dwconv_kernel(x_ref, w_ref, b_ref, o_ref, pad_ref, *, H, W, c0, scale):
  # 7x7 depthwise conv on channels [c0:] of the fused proj_in output.
  # Halo lives in a VMEM scratch; only the 3-wide border strips are zeroed.
  cs = o_ref.shape[-1]
  pad_ref[:, :3, :, :] = jnp.zeros((1, 3, W + 6, cs), jnp.float32)
  pad_ref[:, H + 3:, :, :] = jnp.zeros((1, 3, W + 6, cs), jnp.float32)
  pad_ref[:, 3:3 + H, :3, :] = jnp.zeros((1, H, 3, cs), jnp.float32)
  pad_ref[:, 3:3 + H, W + 3:, :] = jnp.zeros((1, H, 3, cs), jnp.float32)
  pad_ref[:, 3:3 + H, 3:3 + W, :] = x_ref[:, :, :, c0:]       # slice in VMEM

  w = w_ref[...]                                              # (49, cs)
  acc = jnp.zeros(o_ref.shape, jnp.float32)
  for kx in range(7):                                         # hoisted lane shift
    strip = pad_ref[:, :, kx:kx + W, :]                       # (1, H+6, W, cs)
    for ky in range(7):
      acc = acc + strip[:, ky:ky + H, :, :] * w[ky * 7 + kx]
  o_ref[...] = (acc + b_ref[...]) * scale


def _gating_ffn_kernel(*refs, dims, hidden_chunk):
  # Fused: gnconv recursive gating + proj_out + gamma1 + residual,
  # then norm2 (channels_last LN) + pwconv1 + GELU + pwconv2 + gamma2 + residual.
  n_pw = len(dims) - 1
  xin_ref, fused_ref, dw_ref = refs[:3]
  pw_refs = refs[3:3 + 2 * n_pw]
  (wo_ref, bo_ref, g1_ref,
   ln2g_ref, ln2b_ref,
   w1_ref, b1_ref, w2_ref, b2_ref, g2_ref, o_ref) = refs[3 + 2 * n_pw:]

  offs = [0]
  for d in dims:
    offs.append(offs[-1] + d)

  dwv = dw_ref[...]
  # pwa = first dims[0] columns of the fused proj_in output (sliced in VMEM).
  t = fused_ref[:, :dims[0]] * dwv[:, :dims[0]]
  for i in range(n_pw):
    w_r, b_r = pw_refs[2 * i], pw_refs[2 * i + 1]
    k_in, n_out = dims[i], dims[i + 1]
    if k_in <= 16:
      # Tiny K: VPU broadcast multiply-accumulate instead of an MXU dot.
      w = w_r[...]
      acc = jnp.zeros((t.shape[0], n_out), jnp.float32) + b_r[...]
      for k in range(k_in):
        acc = acc + t[:, k:k + 1] * w[k]
      proj = acc
    else:
      proj = jnp.dot(t.astype(w_r.dtype), w_r[...],
                     preferred_element_type=jnp.float32) + b_r[...]
    t = proj * dwv[:, offs[i + 1]:offs[i + 2]]

  y = jnp.dot(t.astype(wo_ref.dtype), wo_ref[...],
              preferred_element_type=jnp.float32) + bo_ref[...]
  x1 = xin_ref[...] + g1_ref[...] * y

  # --- FFN branch (norm2 is the channels_last LayerNorm of the spec) ---
  yn = _layernorm(x1, ln2g_ref[...], ln2b_ref[...])
  yb = yn.astype(w1_ref.dtype)
  hdim = w1_ref.shape[1]
  o = jnp.zeros((yn.shape[0], w2_ref.shape[1]), jnp.float32)
  for k0 in range(0, hdim, hidden_chunk):
    k1 = min(k0 + hidden_chunk, hdim)
    h = _gelu(jnp.dot(yb, w1_ref[:, k0:k1],
                      preferred_element_type=jnp.float32) + b1_ref[:, k0:k1])
    o = o + jnp.dot(h.astype(w2_ref.dtype), w2_ref[k0:k1, :],
                    preferred_element_type=jnp.float32)
  o = o + b2_ref[...]
  o_ref[...] = x1 + g2_ref[...] * o


# ------------------------- wrapper ------------------------------------------


def hor_conv_block(x_nchw, params, dims, scale=1.0, tile_rows=None,
                   mxu_dtype=jnp.bfloat16):
  """Forward pass of HorConvBlock. x_nchw: (B, C, H, W) float32."""
  B, C, H, W = x_nchw.shape
  cs = sum(dims)
  order = len(dims)
  N = B * H * W

  default_tm, vmem_limit = _chip_defaults()
  if tile_rows is None:
    tile_rows = default_tm
  TM, Np = _pick_tile(N, tile_rows)
  grid_rows = Np // TM
  cparams = pltpu.CompilerParams(dimension_semantics=("parallel",),
                                 vmem_limit_bytes=vmem_limit)

  def row_spec(c):
    return pl.BlockSpec((TM, c), lambda i: (i, 0))

  def w_spec(r, c):
    return pl.BlockSpec((r, c), lambda i: (0, 0))   # resident weights

  # Large matmul weights feed the MXU in bf16; biases / LN / gamma stay f32.
  wd = mxu_dtype
  proj_in_w = params['proj_in_w'].astype(wd)
  proj_out_w = params['proj_out_w'].astype(wd)
  fc1_w = params['fc1_w'].astype(wd)
  fc2_w = params['fc2_w'].astype(wd)
  pw_w = [w.astype(wd) if w.shape[0] > 16 else w for w in params['pw_w']]

  # NCHW -> NHWC -> (N, C).
  x2d = jnp.transpose(x_nchw, (0, 2, 3, 1)).reshape(N, C)
  if Np != N:   # only in the (rare) non-divisor fallback
    x2d = jnp.pad(x2d, ((0, Np - N), (0, 0)))

  # --- branch 1: norm1 -> proj_in (row-tiled, weights resident) ---
  fused = pl.pallas_call(
      _ln_proj_kernel,
      grid=(grid_rows,),
      in_specs=[row_spec(C), w_spec(1, C), w_spec(1, C),
                w_spec(C, 2 * C), w_spec(1, 2 * C)],
      out_specs=row_spec(2 * C),
      out_shape=jax.ShapeDtypeStruct((Np, 2 * C), jnp.float32),
      compiler_params=cparams,
  )(x2d, params['ln1_g'][None], params['ln1_b'][None],
    proj_in_w, params['proj_in_b'][None])

  # --- branch 1: 7x7 depthwise conv (column split done in VMEM) ---
  fused_img = fused[:N].reshape(B, H, W, 2 * C)   # free view when Np == N
  dw = pl.pallas_call(
      functools.partial(_dwconv_kernel, H=H, W=W, c0=dims[0], scale=scale),
      grid=(B,),
      in_specs=[pl.BlockSpec((1, H, W, 2 * C), lambda b: (b, 0, 0, 0)),
                pl.BlockSpec((49, cs), lambda b: (0, 0)),
                pl.BlockSpec((1, cs), lambda b: (0, 0))],
      out_specs=pl.BlockSpec((1, H, W, cs), lambda b: (b, 0, 0, 0)),
      out_shape=jax.ShapeDtypeStruct((B, H, W, cs), jnp.float32),
      scratch_shapes=[pltpu.VMEM((1, H + 6, W + 6, cs), jnp.float32)],
      compiler_params=cparams,
  )(fused_img, params['dw_w'], params['dw_b'][None])

  dw2d = dw.reshape(N, cs)
  if Np != N:
    dw2d = jnp.pad(dw2d, ((0, Np - N), (0, 0)))

  # --- fused: gating + proj_out + gamma1 + residual, then norm2 + MLP + gamma2
  #     + residual (single row-tiled pallas_call; no x1 HBM intermediate). ---
  hidden_chunk = min(4 * C, 512)
  inputs = [x2d, fused, dw2d]
  specs = [row_spec(C), row_spec(2 * C), row_spec(cs)]
  for i in range(order - 1):
    inputs += [pw_w[i], params['pw_b'][i][None]]
    specs += [w_spec(dims[i], dims[i + 1]), w_spec(1, dims[i + 1])]
  inputs += [proj_out_w, params['proj_out_b'][None], params['gamma1'][None],
             params['ln2_g'][None], params['ln2_b'][None],
             fc1_w, params['fc1_b'][None], fc2_w, params['fc2_b'][None],
             params['gamma2'][None]]
  specs += [w_spec(C, C), w_spec(1, C), w_spec(1, C),
            w_spec(1, C), w_spec(1, C),
            w_spec(C, 4 * C), w_spec(1, 4 * C), w_spec(4 * C, C), w_spec(1, C),
            w_spec(1, C)]

  out2d = pl.pallas_call(
      functools.partial(_gating_ffn_kernel, dims=tuple(dims),
                        hidden_chunk=hidden_chunk),
      grid=(grid_rows,),
      in_specs=specs,
      out_specs=row_spec(C),
      out_shape=jax.ShapeDtypeStruct((Np, C), jnp.float32),
      # x2d is donated to the output (residual in-place).  Safe: x2d has no
      # later uses in this wrapper; do not reuse it after this call.
      input_output_aliases={0: 0},
      compiler_params=cparams,
  )(*inputs)

  out2d = out2d[:N]
  return jnp.transpose(out2d.reshape(B, H, W, C), (0, 3, 1, 2))


# ------------------------- params & reference --------------------------------


def init_params(key, dim, order=5, layer_scale_init_value=1e-6):
  dims = [dim // 2 ** i for i in range(order)]
  dims.reverse()
  cs = sum(dims)
  ks = iter(jax.random.split(key, 32))

  def w(shape, s=0.02):
    return s * jax.random.normal(next(ks), shape, jnp.float32)

  params = dict(
      ln1_g=jnp.ones((dim,), jnp.float32),
      ln1_b=jnp.zeros((dim,), jnp.float32),
      proj_in_w=w((dim, 2 * dim)),          # 1x1 conv as (in, out) matrix
      proj_in_b=w((2 * dim,)),
      dw_w=w((49, cs)),                     # depthwise 7x7: tap-major (ky*7+kx, channel)
      dw_b=w((cs,)),
      pw_w=[w((dims[i], dims[i + 1])) for i in range(order - 1)],
      pw_b=[w((dims[i + 1],)) for i in range(order - 1)],
      proj_out_w=w((dim, dim)),
      proj_out_b=w((dim,)),
      ln2_g=jnp.ones((dim,), jnp.float32),
      ln2_b=jnp.zeros((dim,), jnp.float32),
      fc1_w=w((dim, 4 * dim)),
      fc1_b=w((4 * dim,)),
      fc2_w=w((4 * dim, dim)),
      fc2_b=w((dim,)),
      gamma1=layer_scale_init_value * jnp.ones((dim,), jnp.float32),
      gamma2=layer_scale_init_value * jnp.ones((dim,), jnp.float32),
  )
  return params, dims


def ref_forward(x_nchw, params, dims, scale=1.0):
  """Plain-JAX f32 reference mirroring the PyTorch forward (for self-check)."""
  B, C, H, W = x_nchw.shape
  cs = sum(dims)
  dot = functools.partial(jnp.dot, precision=jax.lax.Precision.HIGHEST)

  def ln(v, g, b):
    u = jnp.mean(v, -1, keepdims=True)
    s = jnp.mean((v - u) ** 2, -1, keepdims=True)
    return (v - u) / jnp.sqrt(s + EPS) * g + b

  x = jnp.transpose(x_nchw, (0, 2, 3, 1))
  y = ln(x, params['ln1_g'], params['ln1_b'])
  fused = dot(y, params['proj_in_w']) + params['proj_in_b']
  pwa, abc = fused[..., :dims[0]], fused[..., dims[0]:]
  kw = params['dw_w'].reshape(7, 7, 1, cs)
  dwc = jax.lax.conv_general_dilated(
      abc, kw, (1, 1), [(3, 3), (3, 3)],
      dimension_numbers=('NHWC', 'HWIO', 'NHWC'),
      feature_group_count=cs, precision=jax.lax.Precision.HIGHEST)
  dwc = (dwc + params['dw_b']) * scale
  offs = [0]
  for d in dims:
    offs.append(offs[-1] + d)
  t = pwa * dwc[..., offs[0]:offs[1]]
  for i in range(len(dims) - 1):
    t = (dot(t, params['pw_w'][i]) + params['pw_b'][i]) * dwc[..., offs[i + 1]:offs[i + 2]]
  gn = dot(t, params['proj_out_w']) + params['proj_out_b']
  x = x + params['gamma1'] * gn
  inp = x
  y = ln(x, params['ln2_g'], params['ln2_b'])
  y = dot(y, params['fc1_w']) + params['fc1_b']
  y = jax.nn.gelu(y, approximate=False)
  y = dot(y, params['fc2_w']) + params['fc2_b']
  x = inp + params['gamma2'] * y
  return jnp.transpose(x, (0, 3, 1, 2))


if __name__ == "__main__":
  # dim must be divisible by 2**(order-1)=16 for gnconv(order=5) -> use dim=32.
  B, C, H, W = 2, 32, 8, 8
  key = jax.random.PRNGKey(0)
  kx, kp = jax.random.split(key)
  x = jax.random.normal(kx, (B, C, H, W), jnp.float32)
  params, dims = init_params(kp, C)

  # tile_rows=64 -> N=128 rows run as a 2-step pipelined row grid (exercises
  # the grid path); production code should use the chip-aware default.
  fwd = functools.partial(hor_conv_block, tile_rows=64)

  out = jax.block_until_ready(fwd(x, params, dims))
  assert out.shape == (B, C, H, W) and out.dtype == jnp.float32

  # Self-check 1: faithful parameters (layer-scale 1e-6, as in __init__).
  # Branch errors from the bf16 MXU path are scaled by gamma=1e-6 -> tiny.
  ref = ref_forward(x, params, dims)
  err = float(jnp.max(jnp.abs(out - ref)))
  assert jnp.allclose(out, ref, atol=1e-4, rtol=1e-4), err

  # Self-check 2: layer-scale = 1.0 so both branches are numerically exercised.
  # Tolerance is set for bf16 MXU inputs with f32 accumulation (f32 ref).
  params_big = dict(params)
  params_big['gamma1'] = jnp.ones((C,), jnp.float32)
  params_big['gamma2'] = jnp.ones((C,), jnp.float32)
  out_big = jax.block_until_ready(fwd(x, params_big, dims))
  ref_big = ref_forward(x, params_big, dims)
  err_big = float(jnp.max(jnp.abs(out_big - ref_big)))
  assert jnp.allclose(out_big, ref_big, atol=1e-2, rtol=1e-2), err_big

  print("KERNEL_OK")
</pallas_src>

<mosaic_0001>
module attributes {stable_mosaic.version = 11 : i64} {
  func.func @_ln_proj_kernel(%arg0: i32, %arg1: memref<64x32xf32, #tpu.memory_space<vmem>>, %arg2: memref<1x32xf32, #tpu.memory_space<vmem>>, %arg3: memref<1x32xf32, #tpu.memory_space<vmem>>, %arg4: memref<32x64xbf16, #tpu.memory_space<vmem>>, %arg5: memref<1x64xf32, #tpu.memory_space<vmem>>, %arg6: memref<64x64xf32, #tpu.memory_space<vmem>>) attributes {dimension_semantics = [#tpu.dimension_semantics<parallel>], iteration_bounds = array<i64: 2>, scalar_prefetch = 0 : i64, scratch_operands = 0 : i64, tpu.core_type = #tpu.core_type<tc>, window_params = [{transform_indices = @transform_0, window_bounds = array<i64: 64, 32>}, {pipeline_mode = #tpu.pipeline_mode<synchronous>, transform_indices = @transform_1, window_bounds = array<i64: 1, 32>}, {pipeline_mode = #tpu.pipeline_mode<synchronous>, transform_indices = @transform_2, window_bounds = array<i64: 1, 32>}, {pipeline_mode = #tpu.pipeline_mode<synchronous>, transform_indices = @transform_3, window_bounds = array<i64: 32, 64>}, {pipeline_mode = #tpu.pipeline_mode<synchronous>, transform_indices = @transform_4, window_bounds = array<i64: 1, 64>}, {transform_indices = @transform_5, window_bounds = array<i64: 64, 64>}]} {
    %c0 = arith.constant 0 : index
    %c0_0 = arith.constant 0 : index
    %0 = vector.load %arg1[%c0, %c0_0] : memref<64x32xf32, #tpu.memory_space<vmem>>, vector<64x32xf32>
    %c0_1 = arith.constant 0 : index
    %c0_2 = arith.constant 0 : index
    %1 = vector.load %arg2[%c0_1, %c0_2] : memref<1x32xf32, #tpu.memory_space<vmem>>, vector<1x32xf32>
    %c0_3 = arith.constant 0 : index
    %c0_4 = arith.constant 0 : index
    %2 = vector.load %arg3[%c0_3, %c0_4] : memref<1x32xf32, #tpu.memory_space<vmem>>, vector<1x32xf32>
    %cst = arith.constant dense<0.000000e+00> : vector<64xf32>
    %3 = vector.multi_reduction <add>, %0, %cst [1] : vector<64x32xf32> to vector<64xf32>
    %4 = vector.shape_cast %3 : vector<64xf32> to vector<64x1xf32>
    %cst_5 = arith.constant 3.200000e+01 : f32
    %5 = vector.broadcast %cst_5 : f32 to vector<64x1xf32>
    %6 = arith.divf %4, %5 : vector<64x1xf32>
    %7 = vector.broadcast %6 : vector<64x1xf32> to vector<64x32xf32>
    %8 = arith.subf %0, %7 : vector<64x32xf32>
    %9 = arith.mulf %8, %8 : vector<64x32xf32>
    %cst_6 = arith.constant dense<0.000000e+00> : vector<64xf32>
    %10 = vector.multi_reduction <add>, %9, %cst_6 [1] : vector<64x32xf32> to vector<64xf32>
    %11 = vector.shape_cast %10 : vector<64xf32> to vector<64x1xf32>
    %cst_7 = arith.constant 3.200000e+01 : f32
    %12 = vector.broadcast %cst_7 : f32 to vector<64x1xf32>
    %13 = arith.divf %11, %12 : vector<64x1xf32>
    %cst_8 = arith.constant 9.99999997E-7 : f32
    %14 = vector.broadcast %cst_8 : f32 to vector<64x1xf32>
    %15 = arith.addf %13, %14 : vector<64x1xf32>
    %16 = math.rsqrt %15 : vector<64x1xf32>
    %17 = vector.broadcast %16 : vector<64x1xf32> to vector<64x32xf32>
    %18 = arith.mulf %8, %17 : vector<64x32xf32>
    %19 = vector.broadcast %1 : vector<1x32xf32> to vector<64x32xf32>
    %20 = arith.mulf %18, %19 : vector<64x32xf32>
    %21 = vector.broadcast %2 : vector<1x32xf32> to vector<64x32xf32>
    %22 = arith.addf %20, %21 : vector<64x32xf32>
    %23 = arith.truncf %22 : vector<64x32xf32> to vector<64x32xbf16>
    %c0_9 = arith.constant 0 : index
    %c0_10 = arith.constant 0 : index
    %24 = vector.load %arg4[%c0_9, %c0_10] : memref<32x64xbf16, #tpu.memory_space<vmem>>, vector<32x64xbf16>
    %cst_11 = arith.constant dense<0.000000e+00> : vector<64x64xf32>
    %25 = tpu.matmul %23, %24, %cst_11 {dimension_numbers = #tpu.dot_dimension_numbers<[1], [0], [0], [1], [0, 0, 1, 1], [], []>} : vector<64x32xbf16>, vector<32x64xbf16>, vector<64x64xf32> -> vector<64x64xf32>
    %c0_12 = arith.constant 0 : index
    %c0_13 = arith.constant 0 : index
    %26 = vector.load %arg5[%c0_12, %c0_13] : memref<1x64xf32, #tpu.memory_space<vmem>>, vector<1x64xf32>
    %27 = vector.broadcast %26 : vector<1x64xf32> to vector<64x64xf32>
    %28 = arith.addf %25, %27 : vector<64x64xf32>
    %c0_14 = arith.constant 0 : index
    %c0_15 = arith.constant 0 : index
    %29 = vector.load %arg6[%c0_14, %c0_15] : memref<64x64xf32, #tpu.memory_space<vmem>>, vector<64x64xf32>
    tpu.vector_store %arg6[%c0_14, %c0_15], %28 {strides = array<i32>} : memref<64x64xf32, #tpu.memory_space<vmem>>, vector<64x64xf32>,
    return
  }
  func.func @transform_0(%arg0: i32) -> (i32, i32) {
    %c0_i32 = arith.constant 0 : i32
    %c0_i32_0 = arith.constant 0 : i32
    return %arg0, %c0_i32 : i32, i32
  }
  func.func @transform_1(%arg0: i32) -> (i32, i32) {
    %c0_i32 = arith.constant 0 : i32
    %c0_i32_0 = arith.constant 0 : i32
    %c0_i32_1 = arith.constant 0 : i32
    return %c0_i32, %c0_i32_0 : i32, i32
  }
  func.func @transform_2(%arg0: i32) -> (i32, i32) {
    %c0_i32 = arith.constant 0 : i32
    %c0_i32_0 = arith.constant 0 : i32
    %c0_i32_1 = arith.constant 0 : i32
    return %c0_i32, %c0_i32_0 : i32, i32
  }
  func.func @transform_3(%arg0: i32) -> (i32, i32) {
    %c0_i32 = arith.constant 0 : i32
    %c0_i32_0 = arith.constant 0 : i32
    %c0_i32_1 = arith.constant 0 : i32
    return %c0_i32, %c0_i32_0 : i32, i32
  }
  func.func @transform_4(%arg0: i32) -> (i32, i32) {
    %c0_i32 = arith.constant 0 : i32
    %c0_i32_0 = arith.constant 0 : i32
    %c0_i32_1 = arith.constant 0 : i32
    return %c0_i32, %c0_i32_0 : i32, i32
  }
  func.func @transform_5(%arg0: i32) -> (i32, i32) {
    %c0_i32 = arith.constant 0 : i32
    %c0_i32_0 = arith.constant 0 : i32
    return %arg0, %c0_i32 : i32, i32
  }
}

</mosaic_0001>

<llo_original>
// kernel: tpu_custom_call.1
$region0: #{tpu_custom_call.1}
  #allocation0 [shape = 'u32[]', space=smem, size = 0x4, offset = 0x4, fixed_abs, tag = 'smem constant byte address 0x4 - core index']
  #allocation1 [shape = 'u32[144,128]{1,0:T(1,128)}', space=vmem, size = 0x12000, scoped, tag = 'internal scratch']
  %s0 = inlined_call_operand.vmem [shape: f32[128,32], index: 0, kind: input, shape index: {}]
  %s1 = inlined_call_operand.vmem [shape: f32[1,32], index: 1, kind: input, shape index: {}]
  %s2 = inlined_call_operand.vmem [shape: f32[1,32], index: 2, kind: input, shape index: {}]
  %s3 = inlined_call_operand.vmem [shape: bf16[32,64], index: 3, kind: input, shape index: {}]
  %s4 = inlined_call_operand.vmem [shape: f32[1,64], index: 4, kind: input, shape index: {}]
  %s5 = inlined_call_operand.vmem [shape: f32[128,64], index: 5, kind: output, shape index: {}]
  %s6 = sld [smem:[#allocation0]]
  $region53: #{tpu_custom_call.1} parent=0
    _
  %s8 = ssub.s32 1, %s6
  %s9 = scalar_select 0, %s8, %s6
  loop: start=0, step=1, limit=4
  $region2: #{tpu_custom_call.1} parent=0 // loop_pre_header
    _
  $region3: #{tpu_custom_call.1} parent=0 // loop_header
    %s11 = sphi 0, %s15
    %p12 = scmp.ge.s32.totalorder %s11, 4
    %s21 = sphi 0, %s23
    %s24 = sphi 0, %s21
    %s25 = sphi 0, %s24
    %s41 = sphi 0, %s25
    %s45 = sphi 0, %s45
    %s47 = sphi 0, %s45
    %s48 = sphi 0, %s47
    %s62 = sphi 0, %s48
    %s66 = sphi 0, %s66
    %s68 = sphi 0, %s66
    %s69 = sphi 0, %s68
    %s83 = sphi 0, %s69
    %s87 = sphi 0, %s87
    %s89 = sphi 0, %s87
    %s90 = sphi 0, %s89
    %s104 = sphi 0, %s90
    %s108 = sphi 0, %s108
    %s110 = sphi 0, %s108
    %s111 = sphi 0, %s110
    %s125 = sphi 0, %s111
    %s131 = sphi 0, %s133
    %s134 = sphi 0, %s131
    %s135 = sphi 0, %s134
    %s151 = sphi 0, %s135
  $region4: #{tpu_custom_call.1} parent=0 // loop_header_branch
    %14 = sbr.rel (%p12) target = $region8
  $region5: #{tpu_custom_call.1} parent=0 // loop_body
    %s16 = ssub.s32 %s11, 1
    %s17 = ssub.s32 %s11, 2
    %s18 = sadd.s32 %s11, 1
    %s19 = ssub.s32 %s11, %s18
    %p20 = scmp.eq.s32.totalorder %s19, 0
    %s22 = sadd.s32 %s21, 1
    %s23 = scalar_select %p20, %s21, %s22
    %p26 = pneg %p20
    %p27 = scmp.eq.s32.totalorder %s11, 1
    %p28 = por %p26, %p27
    %p29 = scmp.ne.s32.totalorder %s21, %s24
    %p30 = scmp.eq.s32.totalorder %s11, 0
    %p31 = por %p29, %p30
    %p32 = scmp.ne.s32.totalorder %s21, %s24
    %p33 = scmp.eq.s32.totalorder %s16, 1
    %p34 = por %p32, %p33
    %p35 = scmp.ne.s32.totalorder %s24, %s25
    %p36 = scmp.eq.s32.totalorder %s16, 0
    %p37 = por %p35, %p36
    %p38 = scmp.ne.s32.totalorder %s24, %s25
    %p39 = scmp.eq.s32.totalorder %s17, 1
    %p40 = por %p38, %p39
    %p42 = scmp.ne.s32.totalorder %s25, %s41
    %p43 = scmp.eq.s32.totalorder %s17, 0
    %p44 = por %p42, %p43
    %s46 = sadd.s32 %s45, 1
    %p49 = scmp.eq.s32.totalorder %s11, 1
    %p50 = scmp.ne.s32.totalorder %s45, %s47
    %p51 = scmp.eq.s32.totalorder %s11, 0
    %p52 = por %p50, %p51
    %p53 = scmp.ne.s32.totalorder %s45, %s47
    %p54 = scmp.eq.s32.totalorder %s16, 1
    %p55 = por %p53, %p54
    %p56 = scmp.ne.s32.totalorder %s47, %s48
    %p57 = scmp.eq.s32.totalorder %s16, 0
    %p58 = por %p56, %p57
    %p59 = scmp.ne.s32.totalorder %s47, %s48
    %p60 = scmp.eq.s32.totalorder %s17, 1
    %p61 = por %p59, %p60
    %p63 = scmp.ne.s32.totalorder %s48, %s62
    %p64 = scmp.eq.s32.totalorder %s17, 0
    %p65 = por %p63, %p64
    %s67 = sadd.s32 %s66, 1
    %p70 = scmp.eq.s32.totalorder %s11, 1
    %p71 = scmp.ne.s32.totalorder %s66, %s68
    %p72 = scmp.eq.s32.totalorder %s11, 0
    %p73 = por %p71, %p72
    %p74 = scmp.ne.s32.totalorder %s66, %s68
    %p75 = scmp.eq.s32.totalorder %s16, 1
    %p76 = por %p74, %p75
    %p77 = scmp.ne.s32.totalorder %s68, %s69
    %p78 = scmp.eq.s32.totalorder %s16, 0
    %p79 = por %p77, %p78
    %p80 = scmp.ne.s32.totalorder %s68, %s69
    %p81 = scmp.eq.s32.totalorder %s17, 1
    %p82 = por %p80, %p81
    %p84 = scmp.ne.s32.totalorder %s69, %s83
    %p85 = scmp.eq.s32.totalorder %s17, 0
    %p86 = por %p84, %p85
    %s88 = sadd.s32 %s87, 1
    %p91 = scmp.eq.s32.totalorder %s11, 1
    %p92 = scmp.ne.s32.totalorder %s87, %s89
    %p93 = scmp.eq.s32.totalorder %s11, 0
    %p94 = por %p92, %p93
    %p95 = scmp.ne.s32.totalorder %s87, %s89
    %p96 = scmp.eq.s32.totalorder %s16, 1
    %p97 = por %p95, %p96
    %p98 = scmp.ne.s32.totalorder %s89, %s90
    %p99 = scmp.eq.s32.totalorder %s16, 0
    %p100 = por %p98, %p99
    %p101 = scmp.ne.s32.totalorder %s89, %s90
    %p102 = scmp.eq.s32.totalorder %s17, 1
    %p103 = por %p101, %p102
    %p105 = scmp.ne.s32.totalorder %s90, %s104
    %p106 = scmp.eq.s32.totalorder %s17, 0
    %p107 = por %p105, %p106
    %s109 = sadd.s32 %s108, 1
    %p112 = scmp.eq.s32.totalorder %s11, 1
    %p113 = scmp.ne.s32.totalorder %s108, %s110
    %p114 = scmp.eq.s32.totalorder %s11, 0
    %p115 = por %p113, %p114
    %p116 = scmp.ne.s32.totalorder %s108, %s110
    %p117 = scmp.eq.s32.totalorder %s16, 1
    %p118 = por %p116, %p117
    %p119 = scmp.ne.s32.totalorder %s110, %s111
    %p120 = scmp.eq.s32.totalorder %s16, 0
    %p121 = por %p119, %p120
    %p122 = scmp.ne.s32.totalorder %s110, %s111
    %p123 = scmp.eq.s32.totalorder %s17, 1
    %p124 = por %p122, %p123
    %p126 = scmp.ne.s32.totalorder %s111, %s125
    %p127 = scmp.eq.s32.totalorder %s17, 0
    %p128 = por %p126, %p127
    %s129 = ssub.s32 %s11, %s18
    %p130 = scmp.eq.s32.totalorder %s129, 0
    %s132 = sadd.s32 %s131, 1
    %s133 = scalar_select %p130, %s131, %s132
    %p136 = pneg %p130
    %p137 = scmp.eq.s32.totalorder %s11, 1
    %p138 = por %p136, %p137
    %p139 = scmp.ne.s32.totalorder %s131, %s134
    %p140 = scmp.eq.s32.totalorder %s11, 0
    %p141 = por %p139, %p140
    %p142 = scmp.ne.s32.totalorder %s131, %s134
    %p143 = scmp.eq.s32.totalorder %s16, 1
    %p144 = por %p142, %p143
    %p145 = scmp.ne.s32.totalorder %s134, %s135
    %p146 = scmp.eq.s32.totalorder %s16, 0
    %p147 = por %p145, %p146
    %p148 = scmp.ne.s32.totalorder %s134, %s135
    %p149 = scmp.eq.s32.totalorder %s17, 1
    %p150 = por %p148, %p149
    %p152 = scmp.ne.s32.totalorder %s135, %s151
    %p153 = scmp.eq.s32.totalorder %s17, 0
    %p154 = por %p152, %p153
    %p155 = scmp.le.s32.totalorder 1, %s11
    %p156 = scmp.lt.s32.totalorder %s11, 3
    %p157 = pnand %p155, %p156
    %p158 = pneg %p157
    // Predicated region
    $region9: #{tpu_custom_call.1} parent=5 // pred_check
      _
    $region10: #{tpu_custom_call.1} parent=5 // pred_check_branch
      %160 = sbr.rel (%p157) target = $region12
    $region11: #{tpu_custom_call.1} parent=5 // pred_region
      %s161 = ssub.s32 %s11, 1
      // Predicated region
      $region13: #{tpu_custom_call.1} parent=11 // pred_check
        %p162 = pneg %p58
      $region14: #{tpu_custom_call.1} parent=11 // pred_check_branch
        %164 = sbr.rel (%p162) target = $region16
      $region15: #{tpu_custom_call.1} parent=11 // pred_region
        _
      $region16: #{tpu_custom_call.1} parent=11 // pred_fallthru
        _
      // Predicated region
      $region17: #{tpu_custom_call.1} parent=11 // pred_check
        %p165 = pneg %p79
      $region18: #{tpu_custom_call.1} parent=11 // pred_check_branch
        %167 = sbr.rel (%p165) target = $region20
      $region19: #{tpu_custom_call.1} parent=11 // pred_region
        _
      $region20: #{tpu_custom_call.1} parent=11 // pred_fallthru
        _
      // Predicated region
      $region21: #{tpu_custom_call.1} parent=11 // pred_check
        %p168 = pneg %p100
      $region22: #{tpu_custom_call.1} parent=11 // pred_check_branch
        %170 = sbr.rel (%p168) target = $region24
      $region23: #{tpu_custom_call.1} parent=11 // pred_region
        _
      $region24: #{tpu_custom_call.1} parent=11 // pred_fallthru
        _
      // Predicated region
      $region25: #{tpu_custom_call.1} parent=11 // pred_check
        %p171 = pneg %p121
      $region26: #{tpu_custom_call.1} parent=11 // pred_check_branch
        %173 = sbr.rel (%p171) target = $region28
      $region27: #{tpu_custom_call.1} parent=11 // pred_region
        _
      $region28: #{tpu_custom_call.1} parent=11 // pred_fallthru
        _
    $region12: #{tpu_custom_call.1} parent=5 // pred_fallthru
      _
    %p174 = scmp.lt.s32.totalorder %s11, 2
    // Predicated region
    $region29: #{tpu_custom_call.1} parent=5 // pred_check
      %p175 = pneg %p174
    $region30: #{tpu_custom_call.1} parent=5 // pred_check_branch
      %177 = sbr.rel (%p175) target = $region32
    $region31: #{tpu_custom_call.1} parent=5 // pred_region
      // Predicated region
      $region33: #{tpu_custom_call.1} parent=31 // pred_check
        %p178 = pneg %p31
      $region34: #{tpu_custom_call.1} parent=31 // pred_check_branch
        %180 = sbr.rel (%p178) target = $region36
      $region35: #{tpu_custom_call.1} parent=31 // pred_region
        %s181 = smul.u32 8, %s11
        %p182 = scmp.lt.s32.totalorder %s181, 15
        %s183 = scalar_select %p182, %s181, 15
        %s184 = smul.addr %s183, 8
        %s185 = scalar_lea.vmem %s0, %s184
        %s186 = smul.u32 8, %s11
      $region36: #{tpu_custom_call.1} parent=31 // pred_fallthru
        _
    $region32: #{tpu_custom_call.1} parent=5 // pred_fallthru
      _
    %p187 = scmp.le.s32.totalorder 1, %s11
    %p188 = scmp.lt.s32.totalorder %s11, 3
    %p189 = pnand %p187, %p188
    %p190 = pneg %p189
    // Predicated region
    $region37: #{tpu_custom_call.1} parent=5 // pred_check
      _
    $region38: #{tpu_custom_call.1} parent=5 // pred_check_branch
      %192 = sbr.rel (%p189) target = $region40
    $region39: #{tpu_custom_call.1} parent=5 // pred_region
      %s193 = ssub.s32 %s11, 1
      %s194 = smul.u32 8, %s16
      %p195 = scmp.lt.s32.totalorder %s194, 15
      %s196 = scalar_select %p195, %s194, 15
      %s197 = smul.addr %s196, 8
      %s198 = scalar_lea.vmem %s0, %s197
      %p199 = pneg %p37
      %p200 = pneg %p34
      %p201 = pneg %p58
      %p202 = pneg %p55
      %p203 = pneg %p79
      %p204 = pneg %p76
      %p205 = pneg %p100
      %p206 = pneg %p97
      %p207 = pneg %p121
      %p208 = pneg %p118
      %p209 = pneg %p147
      %p210 = pneg %p144
      %s211 = smul.u32 8, %s16
      %p212 = scmp.lt.s32.totalorder %s211, 15
      %s213 = scalar_select %p212, %s211, 15
      %s214 = smul.addr %s213, 8
      %s215 = scalar_lea.vmem %s5, %s214
      %s216 = smul.u32 8, %s16
      %p217 = scmp.lt.s32.totalorder %s216, 15
      %s218 = scalar_select %p217, %s216, 15
      %s219 = smul.addr %s218, 8
      %s220 = scalar_lea.vmem %s0, %s219
      %s221 = smul.u32 8, %s16
      %s222 = smul.u32 8, %s16
      %p223 = scmp.lt.s32.totalorder %s222, 15
      %s224 = scalar_select %p223, %s222, 15
      %s225 = smul.addr %s224, 8
      %s226 = scalar_lea.vmem %s5, %s225
      %s227 = smul.u32 8, %s16
      %v229 = vld [vmem:[%s220] sm:$0xff]
      %v230 = vld [vmem:[%s220 + $0x8] sm:$0xff]
      %v231 = vld [vmem:[%s220 + $0x10] sm:$0xff]
      %v232 = vld [vmem:[%s220 + $0x18] sm:$0xff]
      %v233 = vld [vmem:[%s220 + $0x20] sm:$0xff]
      %v234 = vld [vmem:[%s220 + $0x28] sm:$0xff]
      %v235 = vld [vmem:[%s220 + $0x30] sm:$0xff]
      %v236 = vld [vmem:[%s220 + $0x38] sm:$0xff]
      %v237 = vld [vmem:[%s1] sm:$0x1]
      %v238 = vld [vmem:[%s2] sm:$0x1]
      %vm239 = vcmask 261120
      %v240 = vsel %vm239, %v229, 0.0
      %241 = vadd.xlane.f32.xlu0 %v240
      %v242 = vpop.xlane.xlu0 %241
      %v243 = vsel %vm239, %v230, 0.0
      %244 = vadd.xlane.f32.xlu0 %v243
      %v245 = vpop.xlane.xlu0 %244
      %v246 = vsel %vm239, %v231, 0.0
      %247 = vadd.xlane.f32.xlu0 %v246
      %v248 = vpop.xlane.xlu0 %247
      %v249 = vsel %vm239, %v232, 0.0
      %250 = vadd.xlane.f32.xlu0 %v249
      %v251 = vpop.xlane.xlu0 %250
      %v252 = vsel %vm239, %v233, 0.0
      %253 = vadd.xlane.f32.xlu0 %v252
      %v254 = vpop.xlane.xlu0 %253
      %v255 = vsel %vm239, %v234, 0.0
      %256 = vadd.xlane.f32.xlu0 %v255
      %v257 = vpop.xlane.xlu0 %256
      %v258 = vsel %vm239, %v235, 0.0
      %259 = vadd.xlane.f32.xlu0 %v258
      %v260 = vpop.xlane.xlu0 %259
      %v261 = vsel %vm239, %v236, 0.0
      %262 = vadd.xlane.f32.xlu0 %v261
      %v263 = vpop.xlane.xlu0 %262
      %v264 = vrcp.pop 32.0
      %v265 = vmul.f32 %v242, %v264
      %v266 = vmul.f32 %v245, %v264
      %v267 = vmul.f32 %v248, %v264
      %v268 = vmul.f32 %v251, %v264
      %v269 = vmul.f32 %v254, %v264
      %v270 = vmul.f32 %v257, %v264
      %v271 = vmul.f32 %v260, %v264
      %v272 = vmul.f32 %v263, %v264
      %v273 = vsub.f32 %v229, %v265
      %v274 = vsub.f32 %v230, %v266
      %v275 = vsub.f32 %v231, %v267
      %v276 = vsub.f32 %v232, %v268
      %v277 = vsub.f32 %v233, %v269
      %v278 = vsub.f32 %v234, %v270
      %v279 = vsub.f32 %v235, %v271
      %v280 = vsub.f32 %v236, %v272
      %v281 = vmul.f32 %v273, %v273
      %v282 = vmul.f32 %v274, %v274
      %v283 = vmul.f32 %v275, %v275
      %v284 = vmul.f32 %v276, %v276
      %v285 = vmul.f32 %v277, %v277
      %v286 = vmul.f32 %v278, %v278
      %v287 = vmul.f32 %v279, %v279
      %v288 = vmul.f32 %v280, %v280
      %v289 = vsel %vm239, %v281, 0.0
      %290 = vadd.xlane.f32.xlu0 %v289
      %v291 = vpop.xlane.xlu0 %290
      %v292 = vsel %vm239, %v282, 0.0
      %293 = vadd.xlane.f32.xlu0 %v292
      %v294 = vpop.xlane.xlu0 %293
      %v295 = vsel %vm239, %v283, 0.0
      %296 = vadd.xlane.f32.xlu0 %v295
      %v297 = vpop.xlane.xlu0 %296
      %v298 = vsel %vm239, %v284, 0.0
      %299 = vadd.xlane.f32.xlu0 %v298
      %v300 = vpop.xlane.xlu0 %299
      %v301 = vsel %vm239, %v285, 0.0
      %302 = vadd.xlane.f32.xlu0 %v301
      %v303 = vpop.xlane.xlu0 %302
      %v304 = vsel %vm239, %v286, 0.0
      %305 = vadd.xlane.f32.xlu0 %v304
      %v306 = vpop.xlane.xlu0 %305
      %v307 = vsel %vm239, %v287, 0.0
      %308 = vadd.xlane.f32.xlu0 %v307
      %v309 = vpop.xlane.xlu0 %308
      %v310 = vsel %vm239, %v288, 0.0
      %311 = vadd.xlane.f32.xlu0 %v310
      %v312 = vpop.xlane.xlu0 %311
      %v313 = vmul.f32 %v291, %v264
      %v314 = vmul.f32 %v294, %v264
      %v315 = vmul.f32 %v297, %v264
      %v316 = vmul.f32 %v300, %v264
      %v317 = vmul.f32 %v303, %v264
      %v318 = vmul.f32 %v306, %v264
      %v319 = vmul.f32 %v309, %v264
      %v320 = vmul.f32 %v312, %v264
      %v321 = vadd.f32 %v313, 1e-06
      %v322 = vadd.f32 %v314, 1e-06
      %v323 = vadd.f32 %v315, 1e-06
      %v324 = vadd.f32 %v316, 1e-06
      %v325 = vadd.f32 %v317, 1e-06
      %v326 = vadd.f32 %v318, 1e-06
      %v327 = vadd.f32 %v319, 1e-06
      %v328 = vadd.f32 %v320, 1e-06
      %v329 = vrsqrt.pop %v321
      %v330 = vrsqrt.pop %v322
      %v331 = vrsqrt.pop %v323
      %v332 = vrsqrt.pop %v324
      %v333 = vrsqrt.pop %v325
      %v334 = vrsqrt.pop %v326
      %v335 = vrsqrt.pop %v327
      %v336 = vrsqrt.pop %v328
      %v337 = vmul.f32 %v273, %v329
      %v338 = vmul.f32 %v274, %v330
      %v339 = vmul.f32 %v275, %v331
      %v340 = vmul.f32 %v276, %v332
      %v341 = vmul.f32 %v277, %v333
      %v342 = vmul.f32 %v278, %v334
      %v343 = vmul.f32 %v279, %v335
      %v344 = vmul.f32 %v280, %v336
      %v346 = vlaneseq
      %v347 = vshrl.u32 %v346, 7
      %v348 = vsub.s32 0, %v347
      %v349 = vrot.slane %v237, %v348
      %v351 = vmul.f32 %v337, %v349
      %v352 = vmul.f32 %v338, %v349
      %v353 = vmul.f32 %v339, %v349
      %v354 = vmul.f32 %v340, %v349
      %v355 = vmul.f32 %v341, %v349
      %v356 = vmul.f32 %v342, %v349
      %v357 = vmul.f32 %v343, %v349
      %v358 = vmul.f32 %v344, %v349
      %v360 = vlaneseq
      %v361 = vshrl.u32 %v360, 7
      %v362 = vsub.s32 0, %v361
      %v363 = vrot.slane %v238, %v362
      %v365 = vadd.f32 %v351, %v363
      %v366 = vadd.f32 %v352, %v363
      %v367 = vadd.f32 %v353, %v363
      %v368 = vadd.f32 %v354, %v363
      %v369 = vadd.f32 %v355, %v363
      %v370 = vadd.f32 %v356, %v363
      %v371 = vadd.f32 %v357, %v363
      %v372 = vadd.f32 %v358, %v363
      %v373 = vpack.c.bf16 %v366, %v365
      %v374 = vpack.c.bf16 %v368, %v367
      %v375 = vpack.c.bf16 %v370, %v369
      %v376 = vpack.c.bf16 %v372, %v371
      %v377 = vld [vmem:[%s3] sm:$0xf]
      %v378 = vld [vmem:[%s3 + $0x4] sm:$0xf]
      %v379 = vld [vmem:[%s3 + $0x8] sm:$0xf]
      %v380 = vld [vmem:[%s3 + $0xc] sm:$0xf]
      %v381 = vld [vmem:[%s4] sm:$0x1]
      %v383 = vlaneseq
      %v384 = vshrl.u32 %v383, 7
      %v385 = vsub.s32 0, %v384
      %v386 = vrot.slane %v381, %v385
      %v392 = vunpack.c.l.b16 %v377
      %v393 = vunpack.c.l.b16 %v378
      %v394 = vunpack.c.l.b16 %v379
      %v395 = vunpack.c.l.b16 %v380
      %v396 = vpack.c.b16 %v393, %v392
      %v397 = vpack.c.b16 %v395, %v394
      %v401 = vsel %vm239, %v373, 0
      %v404 = vsel %vm239, %v374, 0
      %v407 = vsel %vm239, %v375, 0
      %v410 = vsel %vm239, %v376, 0
      %412 = vmatprep.subr.bf16.mxu0 0
      %413 = vmatpush1.bf16.msra.mxu0 %v396
      %414 = vmatprep.subr.bf16.mxu0 0
      %415 = vmatpush1.bf16.msra.mxu0 %v397
      %416 = vmatprep.subr.bf16.mxu0 0
      %417 = vmatpush1.bf16.msra.mxu0 0
      %418 = vmatprep.subr.bf16.mxu0 0
      %419 = vmatpush1.bf16.msra.mxu0 0
      %420 = vmatprep.subr.bf16.mxu0 0
      %421 = vmatpush1.bf16.msra.mxu0 0
      %422 = vmatprep.subr.bf16.mxu0 0
      %423 = vmatpush1.bf16.msra.mxu0 0
      %424 = vmatprep.subr.bf16.mxu0 0
      %425 = vmatpush1.bf16.msra.mxu0 0
      %426 = vmatprep.subr.bf16.mxu0 0
      %427 = vmatpush1.bf16.msra.mxu0 0
      %428 = vmatprep.subr.bf16.mxu0 0
      %429 = vmatpush1.bf16.msra.mxu0 0
      %430 = vmatprep.subr.bf16.mxu0 0
      %431 = vmatpush1.bf16.msra.mxu0 0
      %432 = vmatprep.subr.bf16.mxu0 0
      %433 = vmatpush1.bf16.msra.mxu0 0
      %434 = vmatprep.subr.bf16.mxu0 0
      %435 = vmatpush1.bf16.msra.mxu0 0
      %436 = vmatprep.subr.bf16.mxu0 0
      %437 = vmatpush1.bf16.msra.mxu0 0
      %438 = vmatprep.subr.bf16.mxu0 0
      %439 = vmatpush1.bf16.msra.mxu0 0
      %440 = vmatprep.subr.bf16.mxu0 0
      %441 = vmatpush1.bf16.msra.mxu0 0
      %442 = vmatprep.subr.bf16.mxu0 0
      %443 = vmatpush1.bf16.msra.mxu0 0
      %444 = vmatprep.mubr.bf16.mxu0 0
      %445 = vmatmul.mubr.bf16.gmra.mrb[0].mxu0 %v401
      %v446 = vpop.f32.mrb[0].mxu0
      %v447 = vadd.f32 %v386, %v446
      %v448 = vpop.f32.mrb[0].mxu0
      %v449 = vpop.f32.mrb[0].mxu0
      %v450 = vadd.f32 %v386, %v449
      %v451 = vpop.f32.mrb[0].mxu0
      %452 = vmatprep.mubr.bf16.mxu0 0
      %453 = vmatmul.mubr.bf16.gmra.mrb[0].mxu0 %v404
      %v454 = vpop.f32.mrb[0].mxu0
      %v455 = vadd.f32 %v386, %v454
      %v456 = vpop.f32.mrb[0].mxu0
      %v457 = vpop.f32.mrb[0].mxu0
      %v458 = vadd.f32 %v386, %v457
      %v459 = vpop.f32.mrb[0].mxu0
      %460 = vmatprep.mubr.bf16.mxu0 0
      %461 = vmatmul.mubr.bf16.gmra.mrb[0].mxu0 %v407
      %v462 = vpop.f32.mrb[0].mxu0
      %v463 = vadd.f32 %v386, %v462
      %v464 = vpop.f32.mrb[0].mxu0
      %v465 = vpop.f32.mrb[0].mxu0
      %v466 = vadd.f32 %v386, %v465
      %v467 = vpop.f32.mrb[0].mxu0
      %468 = vmatprep.mubr.bf16.mxu0 0
      %469 = vmatmul.mubr.bf16.gmra.mrb[0].mxu0 %v410
      %v470 = vpop.f32.mrb[0].mxu0
      %v471 = vadd.f32 %v386, %v470
      %v472 = vpop.f32.mrb[0].mxu0
      %v473 = vpop.f32.mrb[0].mxu0
      %v474 = vadd.f32 %v386, %v473
      %v475 = vpop.f32.mrb[0].mxu0
      %476 = vdwg.mxu0
      %vm477 = vcmask 523264
      %478 = vst.msk [vmem:[%s226] sm:$0xff] %vm477, %v447
      %479 = vst.msk [vmem:[%s226 + $0x8] sm:$0xff] %vm477, %v450
      %480 = vst.msk [vmem:[%s226 + $0x10] sm:$0xff] %vm477, %v455
      %481 = vst.msk [vmem:[%s226 + $0x18] sm:$0xff] %vm477, %v458
      %482 = vst.msk [vmem:[%s226 + $0x20] sm:$0xff] %vm477, %v463
      %483 = vst.msk [vmem:[%s226 + $0x28] sm:$0xff] %vm477, %v466
      %484 = vst.msk [vmem:[%s226 + $0x30] sm:$0xff] %vm477, %v471
      %485 = vst.msk [vmem:[%s226 + $0x38] sm:$0xff] %vm477, %v474
      %s486 = smul.u32 8, %s16
      %p487 = scmp.lt.s32.totalorder %s486, 15
      %s488 = scalar_select %p487, %s486, 15
      %s489 = smul.addr %s488, 8
      %s490 = scalar_lea.vmem %s5, %s489
      // Predicated region
      $region41: #{tpu_custom_call.1} parent=39 // pred_check
        %p491 = pneg %p144
      $region42: #{tpu_custom_call.1} parent=39 // pred_check_branch
        %493 = sbr.rel (%p491) target = $region44
      $region43: #{tpu_custom_call.1} parent=39 // pred_region
        %s494 = smul.u32 8, %s16
      $region44: #{tpu_custom_call.1} parent=39 // pred_fallthru
        _
    $region40: #{tpu_custom_call.1} parent=5 // pred_fallthru
      _
    %p495 = scmp.le.s32.totalorder 2, %s11
    // Predicated region
    $region45: #{tpu_custom_call.1} parent=5 // pred_check
      %p496 = pneg %p495
    $region46: #{tpu_custom_call.1} parent=5 // pred_check_branch
      %498 = sbr.rel (%p496) target = $region48
    $region47: #{tpu_custom_call.1} parent=5 // pred_region
      %s499 = ssub.s32 %s11, 2
      // Predicated region
      $region49: #{tpu_custom_call.1} parent=47 // pred_check
        %p500 = pneg %p150
      $region50: #{tpu_custom_call.1} parent=47 // pred_check_branch
        %502 = sbr.rel (%p500) target = $region52
      $region51: #{tpu_custom_call.1} parent=47 // pred_region
        %s503 = smul.u32 8, %s17
        %p504 = scmp.lt.s32.totalorder %s503, 15
        %s505 = scalar_select %p504, %s503, 15
        %s506 = smul.addr %s505, 8
        %s507 = scalar_lea.vmem %s5, %s506
      $region52: #{tpu_custom_call.1} parent=47 // pred_fallthru
        _
    $region48: #{tpu_custom_call.1} parent=5 // pred_fallthru
      _
  $region6: #{tpu_custom_call.1} parent=0 // loop_footer
    %s15 = sadd.s32 1, %s11
  $region7: #{tpu_custom_call.1} parent=0 // loop_footer_branch
    %10 = sbr.rel target = $region3
  $region8: #{tpu_custom_call.1} parent=0 // loop_exit
    _

</llo_original>
